<compile_context>
chip_gen: v7x
topology: tpu7x:2x2x1
jax: 0.10.0
libtpu: 0.0.40
codegen_flags: <defaults>
</compile_context>

<pallas_src>
from functools import partial

import jax
import jax.numpy as jnp
from jax.experimental import pallas as pl
from jax.experimental.pallas import tpu as pltpu


def _make_nbv_kernel(rows, tb, lanes, mask_rows, acc_rows):
    grouped = (tb % 8 == 0) and (acc_rows == 8)

    def kernel(lam_ref, pred_ref, tgt_ref, out_ref, acc_ref):
        step = pl.program_id(0)

        @pl.when(step == 0)
        def _init():
            acc_ref[...] = jnp.zeros_like(acc_ref)

        # Keep HBM dtype (e.g. bf16); upcast to f32 for the math.
        p = pred_ref[...].astype(jnp.float32)
        t = tgt_ref[...].astype(jnp.float32)

        if mask_rows:
            # Last row-block may extend past the real array; replace garbage
            # rows with (p=1, t=1) which contribute exactly zero loss.
            row_ids = jax.lax.broadcasted_iota(jnp.int32, (tb, lanes), 0) + step * tb
            valid = row_ids < rows
            p = jnp.where(valid, p, 1.0)
            t = jnp.where(valid, t, 1.0)

        # torch.nn.BCELoss clamps each log term at -100 BEFORE scaling, so
        # p==1/t==1 (and masked rows) give exactly zero, never 0 * -inf.
        log_p = jnp.maximum(jnp.log(p), -100.0)
        log_1mp = jnp.maximum(jnp.log(1.0 - p), -100.0)
        inner = t * log_p + (1.0 - t) * log_1mp          # == -BCE(p, t)

        # Fused masked reduction: lam_ref = [lambda_for1, lambda_for0] (SMEM).
        weight = jnp.where(t == 0.0, lam_ref[1], lam_ref[0])
        x = weight * inner                               # acc -= x  <=>  acc += weight*BCE

        if grouped:
            # Layout-preserving reshape + leading-axis sum: pure VALU vreg adds
            # into a tiny (8, lanes) accumulator.
            acc_ref[...] -= x.reshape(tb // 8, 8, lanes).sum(axis=0)
        else:
            acc_ref[...] -= x

        # Single deferred cross-lane reduction + scalar SMEM write at the end.
        @pl.when(step == pl.num_programs(0) - 1)
        def _finish():
            out_ref[0] = jnp.sum(acc_ref[...])

    return kernel


@partial(jax.jit, static_argnames=("rows", "lanes", "tb", "mask_rows", "acc_rows"))
def _nbv_loss_impl(p_flat, t_flat, lam, *, rows, lanes, tb, mask_rows, acc_rows):
    # Contiguous reshape inside jit -> bitcast, no extra HBM traffic.
    p2d = p_flat.reshape(rows, lanes)
    t2d = t_flat.reshape(rows, lanes)
    grid = (rows + tb - 1) // tb

    kernel = _make_nbv_kernel(rows, tb, lanes, mask_rows, acc_rows)

    out = pl.pallas_call(
        kernel,
        out_shape=jax.ShapeDtypeStruct((1,), jnp.float32),
        grid_spec=pltpu.PrefetchScalarGridSpec(
            num_scalar_prefetch=1,
            grid=(grid,),
            in_specs=[
                pl.BlockSpec((tb, lanes), lambda i, lam_ref: (i, 0)),
                pl.BlockSpec((tb, lanes), lambda i, lam_ref: (i, 0)),
            ],
            out_specs=pl.BlockSpec(memory_space=pltpu.MemorySpace.SMEM),
            scratch_shapes=[pltpu.VMEM((acc_rows, lanes), jnp.float32)],
        ),
        compiler_params=pltpu.CompilerParams(
            dimension_semantics=("arbitrary",),      # accumulation axis
            vmem_limit_bytes=32 * 1024 * 1024,
        ),
    )(lam, p2d, t2d)
    return out[0]


def nbv_loss(predictions, target, lambda_for1, lambda_for0=1.0,
             *, tile_bytes=4 * 1024 * 1024, max_tile_rows=None):
    """Pallas implementation of NBVLoss.forward.

    predictions, target: float arrays of identical shape (predictions in (0,1)).
    Returns a scalar float32.
    """
    assert predictions.shape == target.shape
    if not jnp.issubdtype(target.dtype, jnp.floating):
        target = target.astype(jnp.float32)

    total = int(predictions.size)
    assert total > 0

    p_flat = predictions.reshape(-1)
    t_flat = target.reshape(-1)

    # Lane-dense layout, no host-side padding in the common cases.
    if total % 128 == 0:
        lanes = max(c for c in (128, 256, 512, 1024) if total % c == 0)
        rows = total // lanes
    elif total <= 256 * 1024:
        # Small ragged total: single block whose last dim equals the full dim.
        lanes, rows = total, 1
    else:
        # TODO(synk): rare huge-and-ragged fallback still pads (one extra copy);
        # padded elements (p=1, t=1) contribute exactly zero loss.
        pad = (-total) % 128
        p_flat = jnp.concatenate([p_flat, jnp.ones((pad,), p_flat.dtype)])
        t_flat = jnp.concatenate([t_flat, jnp.ones((pad,), t_flat.dtype)])
        total += pad
        lanes = max(c for c in (128, 256, 512, 1024) if total % c == 0)
        rows = total // lanes

    itemsize = p_flat.dtype.itemsize
    rows_target = max(8, tile_bytes // (lanes * itemsize))
    if max_tile_rows is not None:
        rows_target = max(8, min(rows_target, int(max_tile_rows)))
    rows_target = (rows_target // 8) * 8

    if rows <= rows_target:
        tb = rows                       # block equals the full row dim
        mask_rows = False
    else:
        tb = rows_target                # multiple of 8
        mask_rows = (rows % tb != 0)    # ragged last block handled in-kernel

    acc_rows = 8 if (tb % 8 == 0 and tb >= 8) else tb

    lam = jnp.array([lambda_for1, lambda_for0], dtype=jnp.float32)
    return _nbv_loss_impl(p_flat, t_flat, lam, rows=rows, lanes=lanes, tb=tb,
                          mask_rows=mask_rows, acc_rows=acc_rows)


def nbv_loss_ref(predictions, target, lambda_for1, lambda_for0=1.0):
    """Pure-JAX reference mirroring the PyTorch double loop."""
    p = predictions.astype(jnp.float32)
    t = target.astype(jnp.float32)
    log_p = jnp.maximum(jnp.log(p), -100.0)
    log_1mp = jnp.maximum(jnp.log(1.0 - p), -100.0)
    bce = -(t * log_p + (1.0 - t) * log_1mp)
    is_zero = (t == 0.0)
    loss0 = jnp.sum(jnp.where(is_zero, bce, 0.0))
    loss1 = jnp.sum(jnp.where(is_zero, 0.0, bce))
    return lambda_for1 * loss1 + lambda_for0 * loss0


if __name__ == "__main__":
    # Deterministic "parameter" from __init__: lambda_for1.
    LAMBDA_FOR1 = 10.0

    key = jax.random.PRNGKey(0)
    kp, kt = jax.random.split(key)

    # Small (batch, num_views)-style shape implied by target[i][j].
    B, N = 2, 32
    predictions = jax.nn.sigmoid(jax.random.normal(kp, (B, N), dtype=jnp.float32))
    target = jax.random.bernoulli(kt, p=0.3, shape=(B, N)).astype(jnp.float32)

    out = jax.block_until_ready(nbv_loss(predictions, target, LAMBDA_FOR1))
    ref = nbv_loss_ref(predictions, target, LAMBDA_FOR1)
    assert jnp.allclose(out, ref, rtol=1e-5, atol=1e-5), (out, ref)

    # Multi-tile path: rows=75, tb=8 -> grid=10, ragged last block masked
    # in-kernel, grouped (8, lanes) accumulator exercised.
    kp2, kt2 = jax.random.split(jax.random.PRNGKey(1))
    B2, N2 = 200, 384           # total = 76800 = 75 * 1024
    p2 = jax.nn.sigmoid(jax.random.normal(kp2, (B2, N2), dtype=jnp.float32))
    t2 = jax.random.bernoulli(kt2, p=0.5, shape=(B2, N2)).astype(jnp.float32)
    out2 = jax.block_until_ready(nbv_loss(p2, t2, LAMBDA_FOR1, max_tile_rows=8))
    ref2 = nbv_loss_ref(p2, t2, LAMBDA_FOR1)
    assert jnp.allclose(out2, ref2, rtol=5e-4, atol=1e-2), (out2, ref2)

    # bf16 pass-through path (no wrapper upcast; cast to f32 inside the kernel).
    p3 = p2.astype(jnp.bfloat16)
    t3 = t2.astype(jnp.bfloat16)
    out3 = jax.block_until_ready(nbv_loss(p3, t3, LAMBDA_FOR1))
    ref3 = nbv_loss_ref(p3, t3, LAMBDA_FOR1)
    assert jnp.allclose(out3, ref3, rtol=2e-3, atol=1e-1), (out3, ref3)

    print("KERNEL_OK")
</pallas_src>

<mosaic_0001>
module attributes {stable_mosaic.version = 11 : i64} {
  func.func @kernel(%arg0: i32, %arg1: memref<2xf32, #tpu.memory_space<smem>>, %arg2: memref<1x64xf32, #tpu.memory_space<vmem>>, %arg3: memref<1x64xf32, #tpu.memory_space<vmem>>, %arg4: memref<1xf32, #tpu.memory_space<smem>>, %arg5: memref<1x64xf32, #tpu.memory_space<vmem>>) attributes {dimension_semantics = [#tpu.dimension_semantics<arbitrary>], iteration_bounds = array<i64: 1>, scalar_prefetch = 1 : i64, scratch_operands = 1 : i64, tpu.core_type = #tpu.core_type<tc>, window_params = [{transform_indices = @transform_0, window_bounds = array<i64: 1, 64>}, {transform_indices = @transform_1, window_bounds = array<i64: 1, 64>}, {transform_indices = @transform_2, window_bounds = array<i64: 1>}]} {
    %c0_i32 = arith.constant 0 : i32
    %0 = arith.cmpi eq, %arg0, %c0_i32 : i32
    %1 = arith.extui %0 : i1 to i32
    %c0_i32_0 = arith.constant 0 : i32
    %2 = arith.cmpi ne, %1, %c0_i32_0 : i32
    scf.if %2 {
      %cst_15 = arith.constant 0.000000e+00 : f32
      %32 = vector.broadcast %cst_15 : f32 to vector<1x64xf32>
      %c0_16 = arith.constant 0 : index
      %c0_17 = arith.constant 0 : index
      %33 = vector.load %arg5[%c0_16, %c0_17] : memref<1x64xf32, #tpu.memory_space<vmem>>, vector<1x64xf32>
      tpu.vector_store %arg5[%c0_16, %c0_17], %32 {strides = array<i32>} : memref<1x64xf32, #tpu.memory_space<vmem>>, vector<1x64xf32>,
    } else {
    }
    %c0 = arith.constant 0 : index
    %c0_1 = arith.constant 0 : index
    %3 = vector.load %arg2[%c0, %c0_1] : memref<1x64xf32, #tpu.memory_space<vmem>>, vector<1x64xf32>
    %c0_2 = arith.constant 0 : index
    %c0_3 = arith.constant 0 : index
    %4 = vector.load %arg3[%c0_2, %c0_3] : memref<1x64xf32, #tpu.memory_space<vmem>>, vector<1x64xf32>
    %5 = math.log %3 : vector<1x64xf32>
    %cst = arith.constant -1.000000e+02 : f32
    %6 = vector.broadcast %cst : f32 to vector<1x64xf32>
    %7 = arith.maximumf %5, %6 : vector<1x64xf32>
    %cst_4 = arith.constant 1.000000e+00 : f32
    %8 = vector.broadcast %cst_4 : f32 to vector<1x64xf32>
    %9 = arith.subf %8, %3 : vector<1x64xf32>
    %10 = math.log %9 : vector<1x64xf32>
    %cst_5 = arith.constant -1.000000e+02 : f32
    %11 = vector.broadcast %cst_5 : f32 to vector<1x64xf32>
    %12 = arith.maximumf %10, %11 : vector<1x64xf32>
    %13 = arith.mulf %4, %7 : vector<1x64xf32>
    %cst_6 = arith.constant 1.000000e+00 : f32
    %14 = vector.broadcast %cst_6 : f32 to vector<1x64xf32>
    %15 = arith.subf %14, %4 : vector<1x64xf32>
    %16 = arith.mulf %15, %12 : vector<1x64xf32>
    %17 = arith.addf %13, %16 : vector<1x64xf32>
    %cst_7 = arith.constant 0.000000e+00 : f32
    %18 = vector.broadcast %cst_7 : f32 to vector<1x64xf32>
    %19 = arith.cmpf oeq, %4, %18 : vector<1x64xf32>
    %c1 = arith.constant 1 : index
    %20 = memref.load %arg1[%c1] : memref<2xf32, #tpu.memory_space<smem>>
    %c0_8 = arith.constant 0 : index
    %21 = memref.load %arg1[%c0_8] : memref<2xf32, #tpu.memory_space<smem>>
    %22 = vector.broadcast %20 : f32 to vector<1x64xf32>
    %23 = vector.broadcast %21 : f32 to vector<1x64xf32>
    %24 = arith.select %19, %22, %23 : vector<1x64xi1>, vector<1x64xf32>
    %25 = arith.mulf %24, %17 : vector<1x64xf32>
    %c0_9 = arith.constant 0 : index
    %c0_10 = arith.constant 0 : index
    %26 = vector.load %arg5[%c0_9, %c0_10] : memref<1x64xf32, #tpu.memory_space<vmem>>, vector<1x64xf32>
    %27 = arith.subf %26, %25 : vector<1x64xf32>
    %c0_11 = arith.constant 0 : index
    %c0_12 = arith.constant 0 : index
    %28 = vector.load %arg5[%c0_11, %c0_12] : memref<1x64xf32, #tpu.memory_space<vmem>>, vector<1x64xf32>
    tpu.vector_store %arg5[%c0_11, %c0_12], %27 {strides = array<i32>} : memref<1x64xf32, #tpu.memory_space<vmem>>, vector<1x64xf32>,
    %c0_i32_13 = arith.constant 0 : i32
    %29 = arith.cmpi eq, %arg0, %c0_i32_13 : i32
    %30 = arith.extui %29 : i1 to i32
    %c0_i32_14 = arith.constant 0 : i32
    %31 = arith.cmpi ne, %30, %c0_i32_14 : i32
    scf.if %31 {
      %c0_15 = arith.constant 0 : index
      %c0_16 = arith.constant 0 : index
      %32 = vector.load %arg5[%c0_15, %c0_16] : memref<1x64xf32, #tpu.memory_space<vmem>>, vector<1x64xf32>
      %33 = vector.shape_cast %32 : vector<1x64xf32> to vector<1x1x64xf32>
      %cst_17 = arith.constant dense<0.000000e+00> : vector<1xf32>
      %34 = vector.multi_reduction <add>, %33, %cst_17 [1, 2] : vector<1x1x64xf32> to vector<1xf32>
      %35 = vector.shape_cast %34 : vector<1xf32> to vector<1x1x1xf32>
      %36 = vector.extract %35[0, 0, 0] : f32 from vector<1x1x1xf32>
      %c0_18 = arith.constant 0 : index
      %37 = memref.load %arg4[%c0_18] : memref<1xf32, #tpu.memory_space<smem>>
      memref.store %36, %arg4[%c0_18] : memref<1xf32, #tpu.memory_space<smem>>
    } else {
    }
    return
  }
  func.func @transform_0(%arg0: i32, %arg1: memref<2xf32, #tpu.memory_space<smem>>) -> (i32, i32) {
    %c0_i32 = arith.constant 0 : i32
    %c0_i32_0 = arith.constant 0 : i32
    return %arg0, %c0_i32 : i32, i32
  }
  func.func @transform_1(%arg0: i32, %arg1: memref<2xf32, #tpu.memory_space<smem>>) -> (i32, i32) {
    %c0_i32 = arith.constant 0 : i32
    %c0_i32_0 = arith.constant 0 : i32
    return %arg0, %c0_i32 : i32, i32
  }
  func.func @transform_2(%arg0: i32, %arg1: memref<2xf32, #tpu.memory_space<smem>>) -> i32 {
    %c0_i32 = arith.constant 0 : i32
    %c0_i32_0 = arith.constant 0 : i32
    return %c0_i32 : i32
  }
}

</mosaic_0001>

<llo_original>
// kernel: _nbv_loss_impl.1
$region0: #{_nbv_loss_impl.1}
  #allocation0 [shape = 'u32[]', space=smem, size = 0x4, offset = 0x4, fixed_abs, tag = 'smem constant byte address 0x4 - core index']
  #allocation1 [shape = 'u32[144,128]{1,0:T(1,128)}', space=vmem, size = 0x12000, scoped, tag = 'internal scratch']
  #allocation2 [shape = 'f32[1,64]{1,0:T(1,128)}', space=vmem, size = 0x200, scoped, tag = 'scratch operand']
  #allocation3 [shape = 's32[1]{0}', space=sflag, size = 0x4, scoped, tag = 'scoped memory for _nbv_loss_impl.1']
  #allocation4 [shape = 'u8[512]{0}', space=smem, size = 0x200, scoped, tag = 'prefetched SMEM operand 0']
  %s0 = inlined_call_operand.vmem [shape: f32[2], index: 0, kind: input, shape index: {}]
  %s1 = inlined_call_operand.vmem [shape: f32[1,64], index: 1, kind: input, shape index: {}]
  %s2 = inlined_call_operand.vmem [shape: f32[1,64], index: 2, kind: input, shape index: {}]
  %s3 = inlined_call_operand.hbm [shape: f32[1], index: 3, kind: output, shape index: {}]
  %s4 = sld [smem:[#allocation0]]
  $region26: #{_nbv_loss_impl.1} parent=0
    _
  %s6 = ssub.s32 1, %s4
  %s7 = scalar_select 0, %s6, %s4
  %s8 = sshll.u32 %s0, 4
  %s9 = int_to_ptr.vmem [resolvable:$true] %s8
  %11 = dma.vmem_to_smem %s9, 16, [#allocation4], [#allocation3]
  %12 = dma.done [#allocation3], 16
  %13 = sfence
  $region1: #{_nbv_loss_impl.1} parent=0
    #allocation5 [shape = 'u8[512]{0}', space=smem, size = 0x200, scoped, tag = 'output window, operand 0, single buffered']
    #allocation6 [shape = 's32[1]{0}', space=sflag, size = 0x4, scoped, tag = 'scoped memory for _nbv_loss_impl.1']
    %14 = vsyncpa [#allocation6], 0
    // Predicated region
    $region2: #{_nbv_loss_impl.1} parent=1 // pred_check
      _
    $region3: #{_nbv_loss_impl.1} parent=1 // pred_check_branch
      %16 = sbr.rel (0) target = $region5
    $region4: #{_nbv_loss_impl.1} parent=1 // pred_region
      _
    $region5: #{_nbv_loss_impl.1} parent=1 // pred_fallthru
      _
    // Predicated region
    $region6: #{_nbv_loss_impl.1} parent=1 // pred_check
      _
    $region7: #{_nbv_loss_impl.1} parent=1 // pred_check_branch
      %18 = sbr.rel (0) target = $region9
    $region8: #{_nbv_loss_impl.1} parent=1 // pred_region
      _
    $region9: #{_nbv_loss_impl.1} parent=1 // pred_fallthru
      _
    %p19 = scmp.eq.s32.totalorder 0, 0
    // Predicated region
    $region10: #{_nbv_loss_impl.1} parent=1 // pred_check
      %p20 = pneg %p19
    $region11: #{_nbv_loss_impl.1} parent=1 // pred_check_branch
      %22 = sbr.rel (%p20) target = $region13
    $region12: #{_nbv_loss_impl.1} parent=1 // pred_region
      %vm23 = vcmask 516096
      %24 = vst.msk [vmem:[#allocation2] sm:$0x1] %vm23, 0.0
    $region13: #{_nbv_loss_impl.1} parent=1 // pred_fallthru
      _
    %v25 = vld [vmem:[%s1] sm:$0x1]
    %v26 = vld [vmem:[%s2] sm:$0x1]
    %v27 = vlog2.pop %v25
    %v28 = vmul.f32 %v27, 0.6931472
    %v29 = vmax.f32 %v28, -100.0
    %v30 = vsub.f32 1.0, %v25
    %v31 = vlog2.pop %v30
    %v32 = vmul.f32 %v31, 0.6931472
    %v33 = vmax.f32 %v32, -100.0
    %v34 = vmul.f32 %v26, %v29
    %v35 = vsub.f32 1.0, %v26
    %v36 = vmul.f32 %v35, %v33
    %v37 = vadd.f32 %v34, %v36
    %vm38 = vcmp.eq.f32.partialorder %v26, 0.0
    %s39 = sld [smem:[#allocation4 + $0x1]]
    %s40 = sld [smem:[#allocation4]]
    %v41 = vstv %s39
    %v42 = vstv %s40
    %v43 = vsel %vm38, %v41, %v42
    %v44 = vmul.f32 %v43, %v37
    %v45 = vld [vmem:[#allocation2] sm:$0x1]
    %v46 = vsub.f32 %v45, %v44
    %vm47 = vcmask 516096
    %48 = vst.msk [vmem:[#allocation2] sm:$0x1] %vm47, %v46
    // Predicated region
    $region14: #{_nbv_loss_impl.1} parent=1 // pred_check
      %p49 = pneg %p19
    $region15: #{_nbv_loss_impl.1} parent=1 // pred_check_branch
      %51 = sbr.rel (%p49) target = $region17
    $region16: #{_nbv_loss_impl.1} parent=1 // pred_region
      %v52 = vld [vmem:[#allocation2] sm:$0x1]
      %v53 = vsel %vm47, %v52, 0.0
      %54 = vadd.xlane.f32.xlu0 %v53
      %v55 = vpop.xlane.xlu0 %54
      %v56 = vrot.slane %v55, 4
      %v57 = vadd.f32 %v55, %v56
      %v58 = vrot.slane %v57, 2
      %v59 = vadd.f32 %v57, %v58
      %v60 = vrot.slane %v59, 1
      %v61 = vadd.f32 %v59, %v60
      %s62 = vtos %v61
      %s63 = scalar_lea.smem [#allocation5], 0
      %64 = sst [smem:[%s63]] %s62
    $region17: #{_nbv_loss_impl.1} parent=1 // pred_fallthru
      _
    // Predicated region
    $region18: #{_nbv_loss_impl.1} parent=1 // pred_check
      _
    $region19: #{_nbv_loss_impl.1} parent=1 // pred_check_branch
      %66 = sbr.rel (0) target = $region21
    $region20: #{_nbv_loss_impl.1} parent=1 // pred_region
      %s68 = ssub.s32 16, 16
      %69 = vsyncadd [#allocation6], %s68
      %72 = dma.smem_to_hbm [#allocation5], 16, %s3, [#allocation6]
    $region21: #{_nbv_loss_impl.1} parent=1 // pred_fallthru
      _
    // Predicated region
    $region22: #{_nbv_loss_impl.1} parent=1 // pred_check
      _
    $region23: #{_nbv_loss_impl.1} parent=1 // pred_check_branch
      %74 = sbr.rel (0) target = $region25
    $region24: #{_nbv_loss_impl.1} parent=1 // pred_region
      %75 = dma.done [#allocation6], 16
    $region25: #{_nbv_loss_impl.1} parent=1 // pred_fallthru
      _
    %76 = sfence
    %77 = vsyncpa [#allocation6], 1

</llo_original>
